<compile_context>
chip_gen: v7x
topology: tpu7x:2x2x1
jax: 0.10.0
libtpu: 0.0.40
codegen_flags: <defaults>
</compile_context>

<pallas_src>
import functools

import jax
import jax.numpy as jnp
from jax import lax
from jax.experimental import pallas as pl
from jax.experimental.pallas import tpu as pltpu

BN_EPS = 1e-5
H_CAT = 51          # 3 * 17 (folded away)
H1 = 68             # fc1 output / bn1 features
N_OUT = 17          # fc2 output / bn2 features
_LANE = 128
_SUBLANE = 8
_RECOMPUTE_D_MAX = 136   # below this, re-reading x beats materializing h1 in HBM


def _pad128(n):
    return ((n + _LANE - 1) // _LANE) * _LANE


def _round_up(n, m):
    return ((n + m - 1) // m) * m


# ---------------------------------------------------------------------------
# In-kernel helpers
# ---------------------------------------------------------------------------
def _bn_train(h, gamma, beta):
    """nn.BatchNorm1d training mode over the full block: biased var, eps=1e-5."""
    inv_n = 1.0 / h.shape[0]
    mean = jnp.sum(h, axis=0, keepdims=True) * inv_n
    c = h - mean                                    # reuse centered tensor
    var = jnp.sum(c * c, axis=0, keepdims=True) * inv_n
    return gamma * (c * lax.rsqrt(var + BN_EPS)) + beta


def _write_partial_stats(stats_ref, h, *, tile_b, n_valid, mask_rows):
    """Emit per-tile [sum; centered M2] into stats_ref (block (1, 2, F)).

    Per-tile centering + Chan's combine on the host is exact and avoids the
    E[x^2] - mean^2 cancellation of the naive sum/sumsq formulation.  Padded
    rows (>= n_valid) are excluded.  Writes go straight into sliced ref views.
    """
    if mask_rows:
        row = (lax.broadcasted_iota(jnp.int32, (tile_b, 1), 0)
               + pl.program_id(0) * tile_b)
        valid = row < n_valid
        n_v = jnp.maximum(
            jnp.minimum(tile_b, n_valid - pl.program_id(0) * tile_b), 1
        ).astype(jnp.float32)
        h_m = jnp.where(valid, h, 0.0)
        s = jnp.sum(h_m, axis=0, keepdims=True)
        c = jnp.where(valid, h - s * (1.0 / n_v), 0.0)
    else:
        s = jnp.sum(h, axis=0, keepdims=True)
        c = h - s * (1.0 / tile_b)
    m2 = jnp.sum(c * c, axis=0, keepdims=True)
    stats_ref[0, 0:1, :] = s
    stats_ref[0, 1:2, :] = m2


# ---------------------------------------------------------------------------
# Fused single-block kernel (small batch: whole batch resident in VMEM)
# ---------------------------------------------------------------------------
def fused_kernel(x_ref, weff_ref, beff_ref, wfc2_ref, bfc2_ref,
                 bn1_ref, bn2_ref, out_ref):
    # bn*_ref rows: [gamma; beta]
    x = x_ref[...]
    h1 = jnp.dot(x, weff_ref[...], preferred_element_type=jnp.float32) + beff_ref[...]
    h1 = jnp.maximum(_bn_train(h1, bn1_ref[0:1, :], bn1_ref[1:2, :]), 0.0)
    h2 = jnp.dot(h1, wfc2_ref[...], preferred_element_type=jnp.float32) + bfc2_ref[...]
    out_ref[...] = _bn_train(h2, bn2_ref[0:1, :], bn2_ref[1:2, :]).astype(out_ref.dtype)


# ---------------------------------------------------------------------------
# Tiled path, small D: pass 1 = stats only; pass 2 recomputes h1 from x
# ---------------------------------------------------------------------------
def stats1_kernel(x_ref, weff_ref, beff_ref, stats_ref,
                  *, tile_b, n_valid, mask_rows):
    """Partial bn1 stats of h1 = x @ W_eff + b_eff (h1 is NOT written to HBM)."""
    h1 = (jnp.dot(x_ref[...], weff_ref[...], preferred_element_type=jnp.float32)
          + beff_ref[...])
    _write_partial_stats(stats_ref, h1, tile_b=tile_b, n_valid=n_valid,
                         mask_rows=mask_rows)


def fc_kernel_recompute(x_ref, weff_ref, beff_ref, aff1_ref, wfc2_ref, bfc2_ref,
                        h2_ref, stats_ref, *, tile_b, n_valid, mask_rows):
    """Recompute h1 from x, apply folded bn1 + ReLU, fc2; emit h2 + bn2 stats."""
    h1 = (jnp.dot(x_ref[...], weff_ref[...], preferred_element_type=jnp.float32)
          + beff_ref[...])
    z = jnp.maximum(h1 * aff1_ref[0:1, :] + aff1_ref[1:2, :], 0.0)
    h2 = (jnp.dot(z, wfc2_ref[...], preferred_element_type=jnp.float32)
          + bfc2_ref[...])
    h2_ref[...] = h2
    _write_partial_stats(stats_ref, h2, tile_b=tile_b, n_valid=n_valid,
                         mask_rows=mask_rows)


# ---------------------------------------------------------------------------
# Tiled path, large D fallback: materialize h1 in HBM instead of re-reading x
# ---------------------------------------------------------------------------
def pass1_materialize_kernel(x_ref, weff_ref, beff_ref, h1_ref, stats_ref,
                             *, tile_b, n_valid, mask_rows):
    h1 = (jnp.dot(x_ref[...], weff_ref[...], preferred_element_type=jnp.float32)
          + beff_ref[...])
    h1_ref[...] = h1
    _write_partial_stats(stats_ref, h1, tile_b=tile_b, n_valid=n_valid,
                         mask_rows=mask_rows)


def pass2_materialize_kernel(h1_ref, aff1_ref, wfc2_ref, bfc2_ref,
                             h2_ref, stats_ref, *, tile_b, n_valid, mask_rows):
    z = jnp.maximum(h1_ref[...] * aff1_ref[0:1, :] + aff1_ref[1:2, :], 0.0)
    h2 = (jnp.dot(z, wfc2_ref[...], preferred_element_type=jnp.float32)
          + bfc2_ref[...])
    h2_ref[...] = h2
    _write_partial_stats(stats_ref, h2, tile_b=tile_b, n_valid=n_valid,
                         mask_rows=mask_rows)


# ---------------------------------------------------------------------------
# Host-side parameter folding, stat combination, tile sizing (tiny, one-off)
# ---------------------------------------------------------------------------
def _fold_heads(p):
    w_heads = jnp.concatenate([p["w1"], p["w2"], p["w3"]], axis=1)   # (D, 51)
    b_heads = jnp.concatenate([p["b1"], p["b2"], p["b3"]], axis=1)   # (1, 51)
    w_eff = w_heads @ p["wfc1"]                                      # (D, 68)
    b_eff = b_heads @ p["wfc1"] + p["bfc1"]                          # (1, 68)
    return w_eff, b_eff


def _bn_affine_from_partials(stats, counts, n_total, gamma, beta):
    """Combine per-tile [sum, centered M2] partials (Chan) into BN scale/shift."""
    s = stats[:, 0, :]                                   # (n_tiles, F)
    m2 = stats[:, 1, :]
    mean = jnp.sum(s, axis=0, keepdims=True) / n_total
    tile_mean = s / jnp.maximum(counts, 1.0)[:, None]
    m2_tot = (jnp.sum(m2, axis=0, keepdims=True)
              + jnp.sum(counts[:, None] * (tile_mean - mean) ** 2,
                        axis=0, keepdims=True))
    var = jnp.maximum(m2_tot / n_total, 0.0)
    rstd = lax.rsqrt(var + BN_EPS)
    scale = gamma * rstd
    shift = beta - mean * scale
    return jnp.concatenate([scale, shift], axis=0)       # (2, F)


def _derive_tile_b(d_in):
    """Biggest row tile whose double-buffered (x in + widest out) working set
    stays within a conservative scoped-VMEM budget (v5e 16 / v6e 32 / v7x 32 MiB
    defaults; v7x has only 64 MiB physical per TC)."""
    per_row_bytes = 2 * 4 * (_pad128(d_in) + _LANE)      # 2 bufs, f32, in + out
    budget = 24 << 20
    try:
        cap = getattr(pltpu.get_tpu_info(), "vmem_capacity_bytes", None)
        if cap:
            budget = min(budget, cap // 4)
    except Exception:
        pass                                             # keep conservative default
    tile = budget // per_row_bytes
    return int(max(_SUBLANE, min(8192, (tile // _SUBLANE) * _SUBLANE)))


# ---------------------------------------------------------------------------
# Public wrapper
# ---------------------------------------------------------------------------
def transfer_ensemble_frozen_light(x, params, *, tile_b=None):
    """Forward pass of TransferEnsembleFrozenLight (training-mode BatchNorm)."""
    B, D = x.shape
    w_eff, b_eff = _fold_heads(params)
    if tile_b is None:
        tile_b = _derive_tile_b(D)

    # ---- small batch: single fused whole-array kernel (batch stats exact) ----
    if B <= tile_b:
        bn1 = jnp.concatenate([params["g1"], params["be1"]], axis=0)   # (2, 68)
        bn2 = jnp.concatenate([params["g2"], params["be2"]], axis=0)   # (2, 17)
        vmem = pl.BlockSpec(memory_space=pltpu.MemorySpace.VMEM)
        return pl.pallas_call(
            fused_kernel,
            out_shape=jax.ShapeDtypeStruct((B, N_OUT), jnp.float32),
            in_specs=[vmem] * 7,
            out_specs=vmem,
        )(x, w_eff, b_eff, params["wfc2"], params["bfc2"], bn1, bn2)

    # ---- large batch: batch-tiled, full-batch BN via partial-stat passes ----
    n_tiles = pl.cdiv(B, tile_b)
    if n_tiles > 1 and n_tiles % 2:
        # v7x megacore: even tile count so the "parallel" axis splits across 2 TCs.
        tile_b = max(_SUBLANE, _round_up(pl.cdiv(B, n_tiles + 1), _SUBLANE))
        n_tiles = pl.cdiv(B, tile_b)
    b_pad = n_tiles * tile_b
    mask_rows = b_pad != B
    if mask_rows:
        x = jnp.pad(x, ((0, b_pad - B), (0, 0)))

    counts = jnp.clip(B - jnp.arange(n_tiles, dtype=jnp.float32) * tile_b,
                      0.0, float(tile_b))                # valid rows per tile

    row_spec = lambda f: pl.BlockSpec((tile_b, f), lambda i: (i, 0))
    const_spec = lambda a: pl.BlockSpec(a.shape, lambda i: (0,) * a.ndim)
    stats_spec = lambda f: pl.BlockSpec((1, 2, f), lambda i: (i, 0, 0))

    ws_bytes = 2 * 4 * (_pad128(D) + _LANE) * tile_b
    cp = pltpu.CompilerParams(
        dimension_semantics=("parallel",),
        vmem_limit_bytes=int(max(32 << 20, ws_bytes + (8 << 20))),
    )
    kw = dict(tile_b=tile_b, n_valid=B, mask_rows=mask_rows)

    if D <= _RECOMPUTE_D_MAX:
        # Pass 1: bn1 partial stats only (h1 never hits HBM).
        st1 = pl.pallas_call(
            functools.partial(stats1_kernel, **kw),
            grid=(n_tiles,),
            in_specs=[row_spec(D), const_spec(w_eff), const_spec(b_eff)],
            out_specs=stats_spec(H1),
            out_shape=jax.ShapeDtypeStruct((n_tiles, 2, H1), jnp.float32),
            compiler_params=cp,
        )(x, w_eff, b_eff)
        aff1 = _bn_affine_from_partials(st1, counts, B, params["g1"], params["be1"])

        # Pass 2: recompute h1 from x, bn1+ReLU, fc2; emit h2 + bn2 partial stats.
        h2, st2 = pl.pallas_call(
            functools.partial(fc_kernel_recompute, **kw),
            grid=(n_tiles,),
            in_specs=[row_spec(D), const_spec(w_eff), const_spec(b_eff),
                      const_spec(aff1), const_spec(params["wfc2"]),
                      const_spec(params["bfc2"])],
            out_specs=[row_spec(N_OUT), stats_spec(N_OUT)],
            out_shape=[jax.ShapeDtypeStruct((b_pad, N_OUT), jnp.float32),
                       jax.ShapeDtypeStruct((n_tiles, 2, N_OUT), jnp.float32)],
            compiler_params=cp,
        )(x, w_eff, b_eff, aff1, params["wfc2"], params["bfc2"])
    else:
        # Large-D fallback: materialize h1 once instead of re-reading x.
        # TODO(synk): consider bf16 h1/h2 intermediates here (stats taken from
        # f32 in-kernel) if ~1e-3 relative activation error is acceptable.
        h1, st1 = pl.pallas_call(
            functools.partial(pass1_materialize_kernel, **kw),
            grid=(n_tiles,),
            in_specs=[row_spec(D), const_spec(w_eff), const_spec(b_eff)],
            out_specs=[row_spec(H1), stats_spec(H1)],
            out_shape=[jax.ShapeDtypeStruct((b_pad, H1), jnp.float32),
                       jax.ShapeDtypeStruct((n_tiles, 2, H1), jnp.float32)],
            compiler_params=cp,
        )(x, w_eff, b_eff)
        aff1 = _bn_affine_from_partials(st1, counts, B, params["g1"], params["be1"])

        h2, st2 = pl.pallas_call(
            functools.partial(pass2_materialize_kernel, **kw),
            grid=(n_tiles,),
            in_specs=[row_spec(H1), const_spec(aff1),
                      const_spec(params["wfc2"]), const_spec(params["bfc2"])],
            out_specs=[row_spec(N_OUT), stats_spec(N_OUT)],
            out_shape=[jax.ShapeDtypeStruct((b_pad, N_OUT), jnp.float32),
                       jax.ShapeDtypeStruct((n_tiles, 2, N_OUT), jnp.float32)],
            compiler_params=cp,
        )(h1, aff1, params["wfc2"], params["bfc2"])

    aff2 = _bn_affine_from_partials(st2, counts, B, params["g2"], params["be2"])
    # Final bn2 affine as a plain XLA elementwise op fused with the un-pad slice
    # (no third pallas_call, no extra masked 17-lane kernel stores).
    return h2[:B] * aff2[0:1, :] + aff2[1:2, :]


# ---------------------------------------------------------------------------
# Deterministic parameters & pure-JAX reference (unfolded, validates folding)
# ---------------------------------------------------------------------------
def make_params(key, d_in):
    ks = jax.random.split(key, 5)

    def lin(k, fin, fout):
        kw, kb = jax.random.split(k)
        bound = 1.0 / jnp.sqrt(fin)
        w = jax.random.uniform(kw, (fin, fout), jnp.float32, -bound, bound)
        b = jax.random.uniform(kb, (1, fout), jnp.float32, -bound, bound)
        return w, b

    w1, b1 = lin(ks[0], d_in, 17)
    w2, b2 = lin(ks[1], d_in, 17)
    w3, b3 = lin(ks[2], d_in, 17)
    wfc1, bfc1 = lin(ks[3], H_CAT, H1)
    wfc2, bfc2 = lin(ks[4], H1, N_OUT)
    return dict(
        w1=w1, b1=b1, w2=w2, b2=b2, w3=w3, b3=b3,
        wfc1=wfc1, bfc1=bfc1,
        g1=jnp.ones((1, H1), jnp.float32), be1=jnp.zeros((1, H1), jnp.float32),
        wfc2=wfc2, bfc2=bfc2,
        g2=jnp.ones((1, N_OUT), jnp.float32), be2=jnp.zeros((1, N_OUT), jnp.float32),
    )


def reference(x, p):
    def bn(h, g, b):
        m = jnp.mean(h, axis=0, keepdims=True)
        v = jnp.mean((h - m) ** 2, axis=0, keepdims=True)
        return g * (h - m) / jnp.sqrt(v + BN_EPS) + b

    x1 = x @ p["w1"] + p["b1"]
    x2 = x @ p["w2"] + p["b2"]
    x3 = x @ p["w3"] + p["b3"]
    z = jnp.concatenate([x1, x2, x3], axis=1)
    z = jnp.maximum(bn(z @ p["wfc1"] + p["bfc1"], p["g1"], p["be1"]), 0.0)
    z = bn(z @ p["wfc2"] + p["bfc2"], p["g2"], p["be2"])
    return z


if __name__ == "__main__":
    key = jax.random.PRNGKey(0)
    kx, kp, kx2, kp3, kx3 = jax.random.split(key, 5)

    # 1) Small-batch fused path.
    B, D_IN = 8, 32
    x = jax.random.normal(kx, (B, D_IN), jnp.float32)
    params = make_params(kp, D_IN)
    out = jax.block_until_ready(transfer_ensemble_frozen_light(x, params))
    ref = reference(x, params)
    assert out.shape == (B, N_OUT)
    assert jnp.allclose(out, ref, atol=2e-4, rtol=2e-4), "fused path mismatch"

    # 2) Small-D tiled path (recompute h1 from x), batch padding exercised.
    B2 = 200
    x2 = jax.random.normal(kx2, (B2, D_IN), jnp.float32)
    out2 = jax.block_until_ready(
        transfer_ensemble_frozen_light(x2, params, tile_b=64))
    ref2 = reference(x2, params)
    assert out2.shape == (B2, N_OUT)
    assert jnp.allclose(out2, ref2, atol=2e-4, rtol=2e-4), "tiled path mismatch"

    # 3) Odd tile count -> even rebalancing (v7x megacore) path.
    out2b = jax.block_until_ready(
        transfer_ensemble_frozen_light(x2, params, tile_b=96))
    assert jnp.allclose(out2b, ref2, atol=2e-4, rtol=2e-4), "rebalanced path mismatch"

    # 4) Large-D fallback path (h1 materialized in HBM).
    D3 = 160
    params3 = make_params(kp3, D3)
    x3 = jax.random.normal(kx3, (B2, D3), jnp.float32)
    out3 = jax.block_until_ready(
        transfer_ensemble_frozen_light(x3, params3, tile_b=64))
    ref3 = reference(x3, params3)
    assert out3.shape == (B2, N_OUT)
    assert jnp.allclose(out3, ref3, atol=2e-4, rtol=2e-4), "large-D path mismatch"

    print("KERNEL_OK")
</pallas_src>

<mosaic_0001>
module attributes {stable_mosaic.version = 11 : i64} {
  func.func @fused_kernel(%arg0: memref<8x32xf32, #tpu.memory_space<vmem>>, %arg1: memref<32x68xf32, #tpu.memory_space<vmem>>, %arg2: memref<1x68xf32, #tpu.memory_space<vmem>>, %arg3: memref<68x17xf32, #tpu.memory_space<vmem>>, %arg4: memref<1x17xf32, #tpu.memory_space<vmem>>, %arg5: memref<2x68xf32, #tpu.memory_space<vmem>>, %arg6: memref<2x17xf32, #tpu.memory_space<vmem>>, %arg7: memref<8x17xf32, #tpu.memory_space<vmem>>) attributes {dimension_semantics = [], scalar_prefetch = 0 : i64, scratch_operands = 0 : i64, tpu.core_type = #tpu.core_type<tc>} {
    %c0 = arith.constant 0 : index
    %c0_0 = arith.constant 0 : index
    %0 = vector.load %arg0[%c0, %c0_0] : memref<8x32xf32, #tpu.memory_space<vmem>>, vector<8x32xf32>
    %c0_1 = arith.constant 0 : index
    %c0_2 = arith.constant 0 : index
    %1 = vector.load %arg1[%c0_1, %c0_2] : memref<32x68xf32, #tpu.memory_space<vmem>>, vector<32x68xf32>
    %cst = arith.constant dense<0.000000e+00> : vector<8x68xf32>
    %2 = tpu.matmul %0, %1, %cst {dimension_numbers = #tpu.dot_dimension_numbers<[1], [0], [0], [1], [0, 0, 1, 1], [], []>} : vector<8x32xf32>, vector<32x68xf32>, vector<8x68xf32> -> vector<8x68xf32>
    %c0_3 = arith.constant 0 : index
    %c0_4 = arith.constant 0 : index
    %3 = vector.load %arg2[%c0_3, %c0_4] : memref<1x68xf32, #tpu.memory_space<vmem>>, vector<1x68xf32>
    %4 = vector.broadcast %3 : vector<1x68xf32> to vector<8x68xf32>
    %5 = arith.addf %2, %4 : vector<8x68xf32>
    %c0_5 = arith.constant 0 : index
    %c0_6 = arith.constant 0 : index
    %6 = vector.load %arg5[%c0_5, %c0_6] : memref<2x68xf32, #tpu.memory_space<vmem>>, vector<1x68xf32>
    %c1 = arith.constant 1 : index
    %c0_7 = arith.constant 0 : index
    %7 = vector.load %arg5[%c1, %c0_7] : memref<2x68xf32, #tpu.memory_space<vmem>>, vector<1x68xf32>
    %cst_8 = arith.constant dense<0.000000e+00> : vector<68xf32>
    %8 = vector.multi_reduction <add>, %5, %cst_8 [0] : vector<8x68xf32> to vector<68xf32>
    %9 = vector.shape_cast %8 : vector<68xf32> to vector<1x68xf32>
    %cst_9 = arith.constant 1.250000e-01 : f32
    %10 = vector.broadcast %cst_9 : f32 to vector<1x68xf32>
    %11 = arith.mulf %9, %10 : vector<1x68xf32>
    %12 = vector.broadcast %11 : vector<1x68xf32> to vector<8x68xf32>
    %13 = arith.subf %5, %12 : vector<8x68xf32>
    %14 = arith.mulf %13, %13 : vector<8x68xf32>
    %cst_10 = arith.constant dense<0.000000e+00> : vector<68xf32>
    %15 = vector.multi_reduction <add>, %14, %cst_10 [0] : vector<8x68xf32> to vector<68xf32>
    %16 = vector.shape_cast %15 : vector<68xf32> to vector<1x68xf32>
    %cst_11 = arith.constant 1.250000e-01 : f32
    %17 = vector.broadcast %cst_11 : f32 to vector<1x68xf32>
    %18 = arith.mulf %16, %17 : vector<1x68xf32>
    %cst_12 = arith.constant 9.99999974E-6 : f32
    %19 = vector.broadcast %cst_12 : f32 to vector<1x68xf32>
    %20 = arith.addf %18, %19 : vector<1x68xf32>
    %21 = math.rsqrt %20 : vector<1x68xf32>
    %22 = vector.broadcast %21 : vector<1x68xf32> to vector<8x68xf32>
    %23 = arith.mulf %13, %22 : vector<8x68xf32>
    %24 = vector.broadcast %6 : vector<1x68xf32> to vector<8x68xf32>
    %25 = arith.mulf %24, %23 : vector<8x68xf32>
    %26 = vector.broadcast %7 : vector<1x68xf32> to vector<8x68xf32>
    %27 = arith.addf %25, %26 : vector<8x68xf32>
    %cst_13 = arith.constant 0.000000e+00 : f32
    %28 = vector.broadcast %cst_13 : f32 to vector<8x68xf32>
    %29 = arith.maximumf %27, %28 : vector<8x68xf32>
    %c0_14 = arith.constant 0 : index
    %c0_15 = arith.constant 0 : index
    %30 = vector.load %arg3[%c0_14, %c0_15] : memref<68x17xf32, #tpu.memory_space<vmem>>, vector<68x17xf32>
    %cst_16 = arith.constant dense<0.000000e+00> : vector<8x17xf32>
    %31 = tpu.matmul %29, %30, %cst_16 {dimension_numbers = #tpu.dot_dimension_numbers<[1], [0], [0], [1], [0, 0, 1, 1], [], []>} : vector<8x68xf32>, vector<68x17xf32>, vector<8x17xf32> -> vector<8x17xf32>
    %c0_17 = arith.constant 0 : index
    %c0_18 = arith.constant 0 : index
    %32 = vector.load %arg4[%c0_17, %c0_18] : memref<1x17xf32, #tpu.memory_space<vmem>>, vector<1x17xf32>
    %33 = vector.broadcast %32 : vector<1x17xf32> to vector<8x17xf32>
    %34 = arith.addf %31, %33 : vector<8x17xf32>
    %c0_19 = arith.constant 0 : index
    %c0_20 = arith.constant 0 : index
    %35 = vector.load %arg6[%c0_19, %c0_20] : memref<2x17xf32, #tpu.memory_space<vmem>>, vector<1x17xf32>
    %c1_21 = arith.constant 1 : index
    %c0_22 = arith.constant 0 : index
    %36 = vector.load %arg6[%c1_21, %c0_22] : memref<2x17xf32, #tpu.memory_space<vmem>>, vector<1x17xf32>
    %cst_23 = arith.constant dense<0.000000e+00> : vector<17xf32>
    %37 = vector.multi_reduction <add>, %34, %cst_23 [0] : vector<8x17xf32> to vector<17xf32>
    %38 = vector.shape_cast %37 : vector<17xf32> to vector<1x17xf32>
    %cst_24 = arith.constant 1.250000e-01 : f32
    %39 = vector.broadcast %cst_24 : f32 to vector<1x17xf32>
    %40 = arith.mulf %38, %39 : vector<1x17xf32>
    %41 = vector.broadcast %40 : vector<1x17xf32> to vector<8x17xf32>
    %42 = arith.subf %34, %41 : vector<8x17xf32>
    %43 = arith.mulf %42, %42 : vector<8x17xf32>
    %cst_25 = arith.constant dense<0.000000e+00> : vector<17xf32>
    %44 = vector.multi_reduction <add>, %43, %cst_25 [0] : vector<8x17xf32> to vector<17xf32>
    %45 = vector.shape_cast %44 : vector<17xf32> to vector<1x17xf32>
    %cst_26 = arith.constant 1.250000e-01 : f32
    %46 = vector.broadcast %cst_26 : f32 to vector<1x17xf32>
    %47 = arith.mulf %45, %46 : vector<1x17xf32>
    %cst_27 = arith.constant 9.99999974E-6 : f32
    %48 = vector.broadcast %cst_27 : f32 to vector<1x17xf32>
    %49 = arith.addf %47, %48 : vector<1x17xf32>
    %50 = math.rsqrt %49 : vector<1x17xf32>
    %51 = vector.broadcast %50 : vector<1x17xf32> to vector<8x17xf32>
    %52 = arith.mulf %42, %51 : vector<8x17xf32>
    %53 = vector.broadcast %35 : vector<1x17xf32> to vector<8x17xf32>
    %54 = arith.mulf %53, %52 : vector<8x17xf32>
    %55 = vector.broadcast %36 : vector<1x17xf32> to vector<8x17xf32>
    %56 = arith.addf %54, %55 : vector<8x17xf32>
    %c0_28 = arith.constant 0 : index
    %c0_29 = arith.constant 0 : index
    %57 = vector.load %arg7[%c0_28, %c0_29] : memref<8x17xf32, #tpu.memory_space<vmem>>, vector<8x17xf32>
    tpu.vector_store %arg7[%c0_28, %c0_29], %56 {strides = array<i32>} : memref<8x17xf32, #tpu.memory_space<vmem>>, vector<8x17xf32>,
    return
  }
}

</mosaic_0001>

<llo_original>
// kernel: tpu_custom_call.1
$region0: #{tpu_custom_call.1}
  #allocation0 [shape = 'u32[]', space=smem, size = 0x4, offset = 0x4, fixed_abs, tag = 'smem constant byte address 0x4 - core index']
  #allocation1 [shape = 'u32[144,128]{1,0:T(1,128)}', space=vmem, size = 0x12000, scoped, tag = 'internal scratch']
  %s0 = inlined_call_operand.vmem [shape: f32[8,32], index: 0, kind: input, shape index: {}]
  %s1 = inlined_call_operand.vmem [shape: f32[32,68], index: 1, kind: input, shape index: {}]
  %s2 = inlined_call_operand.vmem [shape: f32[1,68], index: 2, kind: input, shape index: {}]
  %s3 = inlined_call_operand.vmem [shape: f32[68,17], index: 3, kind: input, shape index: {}]
  %s4 = inlined_call_operand.vmem [shape: f32[1,17], index: 4, kind: input, shape index: {}]
  %s5 = inlined_call_operand.vmem [shape: f32[2,68], index: 5, kind: input, shape index: {}]
  %s6 = inlined_call_operand.vmem [shape: f32[2,17], index: 6, kind: input, shape index: {}]
  %s7 = inlined_call_operand.hbm [shape: f32[8,17], index: 7, kind: output, shape index: {}]
  %s8 = sld [smem:[#allocation0]]
  $region38: #{tpu_custom_call.1} parent=0
    _
  %s10 = ssub.s32 1, %s8
  %s11 = scalar_select 0, %s10, %s8
  $region1: #{tpu_custom_call.1} parent=0
    #allocation2 [shape = 'u8[4096]{0}', space=vmem, size = 0x1000, scoped, tag = 'output window, operand 0, single buffered']
    #allocation3 [shape = 's32[1]{0}', space=sflag, size = 0x4, scoped, tag = 'scoped memory for tpu_custom_call.1']
    %12 = vsyncpa [#allocation3], 0
    // Predicated region
    $region2: #{tpu_custom_call.1} parent=1 // pred_check
      _
    $region3: #{tpu_custom_call.1} parent=1 // pred_check_branch
      %14 = sbr.rel (0) target = $region5
    $region4: #{tpu_custom_call.1} parent=1 // pred_region
      _
    $region5: #{tpu_custom_call.1} parent=1 // pred_fallthru
      _
    // Predicated region
    $region6: #{tpu_custom_call.1} parent=1 // pred_check
      _
    $region7: #{tpu_custom_call.1} parent=1 // pred_check_branch
      %16 = sbr.rel (0) target = $region9
    $region8: #{tpu_custom_call.1} parent=1 // pred_region
      _
    $region9: #{tpu_custom_call.1} parent=1 // pred_fallthru
      _
    // Predicated region
    $region10: #{tpu_custom_call.1} parent=1 // pred_check
      _
    $region11: #{tpu_custom_call.1} parent=1 // pred_check_branch
      %18 = sbr.rel (0) target = $region13
    $region12: #{tpu_custom_call.1} parent=1 // pred_region
      _
    $region13: #{tpu_custom_call.1} parent=1 // pred_fallthru
      _
    // Predicated region
    $region14: #{tpu_custom_call.1} parent=1 // pred_check
      _
    $region15: #{tpu_custom_call.1} parent=1 // pred_check_branch
      %20 = sbr.rel (0) target = $region17
    $region16: #{tpu_custom_call.1} parent=1 // pred_region
      _
    $region17: #{tpu_custom_call.1} parent=1 // pred_fallthru
      _
    // Predicated region
    $region18: #{tpu_custom_call.1} parent=1 // pred_check
      _
    $region19: #{tpu_custom_call.1} parent=1 // pred_check_branch
      %22 = sbr.rel (0) target = $region21
    $region20: #{tpu_custom_call.1} parent=1 // pred_region
      _
    $region21: #{tpu_custom_call.1} parent=1 // pred_fallthru
      _
    // Predicated region
    $region22: #{tpu_custom_call.1} parent=1 // pred_check
      _
    $region23: #{tpu_custom_call.1} parent=1 // pred_check_branch
      %24 = sbr.rel (0) target = $region25
    $region24: #{tpu_custom_call.1} parent=1 // pred_region
      _
    $region25: #{tpu_custom_call.1} parent=1 // pred_fallthru
      _
    // Predicated region
    $region26: #{tpu_custom_call.1} parent=1 // pred_check
      _
    $region27: #{tpu_custom_call.1} parent=1 // pred_check_branch
      %26 = sbr.rel (0) target = $region29
    $region28: #{tpu_custom_call.1} parent=1 // pred_region
      _
    $region29: #{tpu_custom_call.1} parent=1 // pred_fallthru
      _
    %v27 = vld [vmem:[%s0] sm:$0xff]
    %v28 = vld [vmem:[%s1] sm:$0xff]
    %v29 = vld [vmem:[%s1 + $0x8] sm:$0xff]
    %v30 = vld [vmem:[%s1 + $0x10] sm:$0xff]
    %v31 = vld [vmem:[%s1 + $0x18] sm:$0xff]
    %v32 = vld [vmem:[%s2] sm:$0x1]
    %v34 = vlaneseq
    %v35 = vshrl.u32 %v34, 7
    %v36 = vsub.s32 0, %v35
    %v37 = vrot.slane %v32, %v36
    %vm39 = vcmask 261120
    %v41 = vsel %vm39, %v27, 0
    %43 = vmatprep.subr.mxu0 0.0
    %44 = vmatpush1.msra.mxu0 %v28
    %45 = vmatprep.subr.mxu0 0.0
    %46 = vmatpush1.msra.mxu0 %v29
    %47 = vmatprep.subr.mxu0 0.0
    %48 = vmatpush1.msra.mxu0 %v30
    %49 = vmatprep.subr.mxu0 0.0
    %50 = vmatpush1.msra.mxu0 %v31
    %51 = vmatprep.subr.mxu0 0.0
    %52 = vmatpush1.msra.mxu0 0.0
    %53 = vmatprep.subr.mxu0 0.0
    %54 = vmatpush1.msra.mxu0 0.0
    %55 = vmatprep.subr.mxu0 0.0
    %56 = vmatpush1.msra.mxu0 0.0
    %57 = vmatprep.subr.mxu0 0.0
    %58 = vmatpush1.msra.mxu0 0.0
    %59 = vmatprep.subr.mxu0 0.0
    %60 = vmatpush1.msra.mxu0 0.0
    %61 = vmatprep.subr.mxu0 0.0
    %62 = vmatpush1.msra.mxu0 0.0
    %63 = vmatprep.subr.mxu0 0.0
    %64 = vmatpush1.msra.mxu0 0.0
    %65 = vmatprep.subr.mxu0 0.0
    %66 = vmatpush1.msra.mxu0 0.0
    %67 = vmatprep.subr.mxu0 0.0
    %68 = vmatpush1.msra.mxu0 0.0
    %69 = vmatprep.subr.mxu0 0.0
    %70 = vmatpush1.msra.mxu0 0.0
    %71 = vmatprep.subr.mxu0 0.0
    %72 = vmatpush1.msra.mxu0 0.0
    %73 = vmatprep.subr.mxu0 0.0
    %74 = vmatpush1.msra.mxu0 0.0
    %75 = vmatprep.subr.mxu0 0.0
    %76 = vmatpush1.msra.mxu0 0.0
    %77 = vmatprep.subr.mxu0 0.0
    %78 = vmatpush1.msra.mxu0 0.0
    %79 = vmatprep.subr.mxu0 0.0
    %80 = vmatpush1.msra.mxu0 0.0
    %81 = vmatprep.subr.mxu0 0.0
    %82 = vmatpush1.msra.mxu0 0.0
    %83 = vmatprep.subr.mxu0 0.0
    %84 = vmatpush1.msra.mxu0 0.0
    %85 = vmatprep.subr.mxu0 0.0
    %86 = vmatpush1.msra.mxu0 0.0
    %87 = vmatprep.subr.mxu0 0.0
    %88 = vmatpush1.msra.mxu0 0.0
    %89 = vmatprep.subr.mxu0 0.0
    %90 = vmatpush1.msra.mxu0 0.0
    %91 = vmatprep.subr.mxu0 0.0
    %92 = vmatpush1.msra.mxu0 0.0
    %93 = vmatprep.subr.mxu0 0.0
    %94 = vmatpush1.msra.mxu0 0.0
    %95 = vmatprep.subr.mxu0 0.0
    %96 = vmatpush1.msra.mxu0 0.0
    %97 = vmatprep.subr.mxu0 0.0
    %98 = vmatpush1.msra.mxu0 0.0
    %99 = vmatprep.subr.mxu0 0.0
    %100 = vmatpush1.msra.mxu0 0.0
    %101 = vmatprep.subr.mxu0 0.0
    %102 = vmatpush1.msra.mxu0 0.0
    %103 = vmatprep.subr.mxu0 0.0
    %104 = vmatpush1.msra.mxu0 0.0
    %105 = vmatprep.subr.mxu0 0.0
    %106 = vmatpush1.msra.mxu0 0.0
    %107 = vmatprep.mubr.f32.mxu0 0.0
    %108 = vmatmul.mubr.f32.gmra.mrb[0].mxu0 %v41
    %v109 = vpop.f32.mrb[0].mxu0
    %v110 = vadd.f32 %v37, %v109
    %v111 = vpop.f32.mrb[0].mxu0
    %112 = vdwg.mxu0
    %v113 = vld [vmem:[%s5] sm:$0x1]
    %v114 = vld [vmem:[%s5 + $0x1] sm:$0x1]
    %vm115 = vcmask 556032
    %v116 = vsel %vm115, %v110, 0.0
    %v117 = vrot.slane %v116, 4
    %v118 = vadd.f32 %v116, %v117
    %v119 = vrot.slane %v118, 2
    %v120 = vadd.f32 %v118, %v119
    %v121 = vrot.slane %v120, 1
    %v122 = vadd.f32 %v120, %v121
    %v123 = vmul.f32 %v122, 0.125
    %v124 = vsub.f32 %v110, %v123
    %v125 = vmul.f32 %v124, %v124
    %v126 = vsel %vm115, %v125, 0.0
    %v127 = vrot.slane %v126, 4
    %v128 = vadd.f32 %v126, %v127
    %v129 = vrot.slane %v128, 2
    %v130 = vadd.f32 %v128, %v129
    %v131 = vrot.slane %v130, 1
    %v132 = vadd.f32 %v130, %v131
    %v133 = vmul.f32 %v132, 0.125
    %v134 = vadd.f32 %v133, 1e-05
    %v135 = vrsqrt.pop %v134
    %v136 = vmul.f32 %v124, %v135
    %v137 = vlaneseq
    %v138 = vshrl.u32 %v137, 7
    %v139 = vsub.s32 0, %v138
    %v140 = vrot.slane %v113, %v139
    %v141 = vmul.f32 %v140, %v136
    %v142 = vlaneseq
    %v143 = vshrl.u32 %v142, 7
    %v144 = vsub.s32 0, %v143
    %v145 = vrot.slane %v114, %v144
    %v146 = vadd.f32 %v141, %v145
    %v147 = vmax.f32 %v146, 0.0
    %v148 = vld [vmem:[%s3] sm:$0xff]
    %v149 = vld [vmem:[%s3 + $0x8] sm:$0xff]
    %v150 = vld [vmem:[%s3 + $0x10] sm:$0xff]
    %v151 = vld [vmem:[%s3 + $0x18] sm:$0xff]
    %v152 = vld [vmem:[%s3 + $0x20] sm:$0xff]
    %v153 = vld [vmem:[%s3 + $0x28] sm:$0xff]
    %v154 = vld [vmem:[%s3 + $0x30] sm:$0xff]
    %v155 = vld [vmem:[%s3 + $0x38] sm:$0xff]
    %v156 = vld [vmem:[%s3 + $0x40] sm:$0xf]
    %v157 = vld [vmem:[%s4] sm:$0x1]
    %v159 = vlaneseq
    %v160 = vshrl.u32 %v159, 7
    %v161 = vsub.s32 0, %v160
    %v162 = vrot.slane %v157, %v161
    %v165 = vsel %vm115, %v147, 0
    %vm167 = vcmask 1043456
    %v169 = vsel %vm167, %v156, 0
    %171 = vmatprep.subr.mxu0 0.0
    %172 = vmatpush1.msra.mxu0 %v148
    %173 = vmatprep.subr.mxu0 0.0
    %174 = vmatpush1.msra.mxu0 %v149
    %175 = vmatprep.subr.mxu0 0.0
    %176 = vmatpush1.msra.mxu0 %v150
    %177 = vmatprep.subr.mxu0 0.0
    %178 = vmatpush1.msra.mxu0 %v151
    %179 = vmatprep.subr.mxu0 0.0
    %180 = vmatpush1.msra.mxu0 %v152
    %181 = vmatprep.subr.mxu0 0.0
    %182 = vmatpush1.msra.mxu0 %v153
    %183 = vmatprep.subr.mxu0 0.0
    %184 = vmatpush1.msra.mxu0 %v154
    %185 = vmatprep.subr.mxu0 0.0
    %186 = vmatpush1.msra.mxu0 %v155
    %187 = vmatprep.subr.mxu0 0.0
    %188 = vmatpush1.msra.mxu0 %v169
    %189 = vmatprep.subr.mxu0 0.0
    %190 = vmatpush1.msra.mxu0 0.0
    %191 = vmatprep.subr.mxu0 0.0
    %192 = vmatpush1.msra.mxu0 0.0
    %193 = vmatprep.subr.mxu0 0.0
    %194 = vmatpush1.msra.mxu0 0.0
    %195 = vmatprep.subr.mxu0 0.0
    %196 = vmatpush1.msra.mxu0 0.0
    %197 = vmatprep.subr.mxu0 0.0
    %198 = vmatpush1.msra.mxu0 0.0
    %199 = vmatprep.subr.mxu0 0.0
    %200 = vmatpush1.msra.mxu0 0.0
    %201 = vmatprep.subr.mxu0 0.0
    %202 = vmatpush1.msra.mxu0 0.0
    %203 = vmatprep.subr.mxu0 0.0
    %204 = vmatpush1.msra.mxu0 0.0
    %205 = vmatprep.subr.mxu0 0.0
    %206 = vmatpush1.msra.mxu0 0.0
    %207 = vmatprep.subr.mxu0 0.0
    %208 = vmatpush1.msra.mxu0 0.0
    %209 = vmatprep.subr.mxu0 0.0
    %210 = vmatpush1.msra.mxu0 0.0
    %211 = vmatprep.subr.mxu0 0.0
    %212 = vmatpush1.msra.mxu0 0.0
    %213 = vmatprep.subr.mxu0 0.0
    %214 = vmatpush1.msra.mxu0 0.0
    %215 = vmatprep.subr.mxu0 0.0
    %216 = vmatpush1.msra.mxu0 0.0
    %217 = vmatprep.subr.mxu0 0.0
    %218 = vmatpush1.msra.mxu0 0.0
    %219 = vmatprep.subr.mxu0 0.0
    %220 = vmatpush1.msra.mxu0 0.0
    %221 = vmatprep.subr.mxu0 0.0
    %222 = vmatpush1.msra.mxu0 0.0
    %223 = vmatprep.subr.mxu0 0.0
    %224 = vmatpush1.msra.mxu0 0.0
    %225 = vmatprep.subr.mxu0 0.0
    %226 = vmatpush1.msra.mxu0 0.0
    %227 = vmatprep.subr.mxu0 0.0
    %228 = vmatpush1.msra.mxu0 0.0
    %229 = vmatprep.subr.mxu0 0.0
    %230 = vmatpush1.msra.mxu0 0.0
    %231 = vmatprep.subr.mxu0 0.0
    %232 = vmatpush1.msra.mxu0 0.0
    %233 = vmatprep.subr.mxu0 0.0
    %234 = vmatpush1.msra.mxu0 0.0
    %235 = vmatprep.mubr.f32.mxu0 0.0
    %236 = vmatmul.mubr.f32.gmra.mrb[0].mxu0 %v165
    %v237 = vpop.f32.mrb[0].mxu0
    %v238 = vadd.f32 %v162, %v237
    %v239 = vpop.f32.mrb[0].mxu0
    %240 = vdwg.mxu0
    %v241 = vld [vmem:[%s6] sm:$0x1]
    %v242 = vld [vmem:[%s6 + $0x1] sm:$0x1]
    %vm243 = vcmask 138240
    %v244 = vsel %vm243, %v238, 0.0
    %v245 = vrot.slane %v244, 4
    %v246 = vadd.f32 %v244, %v245
    %v247 = vrot.slane %v246, 2
    %v248 = vadd.f32 %v246, %v247
    %v249 = vrot.slane %v248, 1
    %v250 = vadd.f32 %v248, %v249
    %v251 = vmul.f32 %v250, 0.125
    %v252 = vsub.f32 %v238, %v251
    %v253 = vmul.f32 %v252, %v252
    %v254 = vsel %vm243, %v253, 0.0
    %v255 = vrot.slane %v254, 4
    %v256 = vadd.f32 %v254, %v255
    %v257 = vrot.slane %v256, 2
    %v258 = vadd.f32 %v256, %v257
    %v259 = vrot.slane %v258, 1
    %v260 = vadd.f32 %v258, %v259
    %v261 = vmul.f32 %v260, 0.125
    %v262 = vadd.f32 %v261, 1e-05
    %v263 = vrsqrt.pop %v262
    %v264 = vmul.f32 %v252, %v263
    %v265 = vlaneseq
    %v266 = vshrl.u32 %v265, 7
    %v267 = vsub.s32 0, %v266
    %v268 = vrot.slane %v241, %v267
    %v269 = vmul.f32 %v268, %v264
    %v270 = vlaneseq
    %v271 = vshrl.u32 %v270, 7
    %v272 = vsub.s32 0, %v271
    %v273 = vrot.slane %v242, %v272
    %v274 = vadd.f32 %v269, %v273
    %275 = vst.msk [vmem:[#allocation2] sm:$0xff] %vm243, %v274
    // Predicated region
    $region30: #{tpu_custom_call.1} parent=1 // pred_check
      _
    $region31: #{tpu_custom_call.1} parent=1 // pred_check_branch
      %277 = sbr.rel (0) target = $region33
    $region32: #{tpu_custom_call.1} parent=1 // pred_region
      %s279 = ssub.s32 128, 128
      %280 = vsyncadd [#allocation3], %s279
      %s282 = sshll.u32 [#allocation2], 4
      %s283 = int_to_ptr.vmem [resolvable:$true] %s282
      %285 = dma.vmem_to_hbm [thread:$0]  %s283, 128, %s7, [#allocation3]
    $region33: #{tpu_custom_call.1} parent=1 // pred_fallthru
      _
    // Predicated region
    $region34: #{tpu_custom_call.1} parent=1 // pred_check
      _
    $region35: #{tpu_custom_call.1} parent=1 // pred_check_branch
      %287 = sbr.rel (0) target = $region37
    $region36: #{tpu_custom_call.1} parent=1 // pred_region
      %288 = dma.done [#allocation3], 128
    $region37: #{tpu_custom_call.1} parent=1 // pred_fallthru
      _
    %289 = vsyncpa [#allocation3], 1

</llo_original>
